<compile_context>
chip_gen: v6e
topology: v6e:2x2x1
jax: 0.10.0
libtpu: 0.0.40
codegen_flags: <defaults>
</compile_context>

<pallas_src>
import math

import jax
import jax.numpy as jnp
from jax.experimental import pallas as pl
from jax.experimental.pallas import tpu as pltpu


def _mlp_kernel(x_ref, w1_ref, b1_ref, w2_ref, b2_ref, o_ref):
    """Fused Linear -> ReLU -> Linear on one row-tile of the (packed) input."""
    x = x_ref[...]                                               # (tm, Fp)
    h = jnp.dot(x, w1_ref[...], preferred_element_type=jnp.float32)
    h = jnp.maximum(h + b1_ref[...], 0.0)                        # (tm, Hp) f32
    y = jnp.dot(h.astype(w2_ref.dtype), w2_ref[...],
                preferred_element_type=jnp.float32)
    o_ref[...] = (y + b2_ref[...]).astype(o_ref.dtype)


def _round_up(x, n):
    return -(-x // n) * n


def _choose_pack(in_feats, *, max_packed_width=512, max_pack=8):
    """Fold `pack` logical rows into one lane-dense packed row.

    [M, F] row-major is byte-identical to [M/pack, F*pack], so this is pure
    relabeling; block-diagonal weights (kron(I_pack, W)) keep rows independent.
    """
    if in_feats % 128 == 0:
        return 1
    pack = math.lcm(in_feats, 128) // in_feats
    if pack <= max_pack and pack * in_feats <= max_packed_width:
        return pack
    # TODO(synk): F >= 128 and not a multiple of 128 with a huge lcm would need
    # zero-padded activation columns (an extra HBM pass) to stay lane-dense;
    # fall back to masked-lane loads/stores instead.
    return 1


def make_non_linear_projector(w1, b1, w2, b2, *, tm_max=8192):
    """Build the projector; all weight packing happens exactly once here.

    w1: [F, H], b1: [H], w2: [H, F], b2: [F] -- already the [in, out] layout,
    i.e. the kernel computes x @ W (PyTorch Linear stores [out, in], x @ W.T).
    """
    in_feats, hidden = w1.shape
    pack = _choose_pack(in_feats)
    f_p = in_feats * pack
    h_p = _round_up(hidden * pack, 128)        # lane-dense hidden (zero-padded)

    if pack > 1:
        w1p = jnp.kron(jnp.eye(pack, dtype=w1.dtype), w1)   # [Fp, H*pack]
        w2p = jnp.kron(jnp.eye(pack, dtype=w2.dtype), w2)   # [H*pack, Fp]
        b1p = jnp.tile(b1, pack)
        b2p = jnp.tile(b2, pack)
    else:
        w1p, w2p, b1p, b2p = w1, w2, b1, b2

    hid_pad = h_p - hidden * pack
    if hid_pad:
        # Padded hidden units: zero W1 cols + zero b1 -> ReLU(0)=0, and the
        # matching zero W2 rows contribute nothing.  Keeps h lane-dense.
        w1p = jnp.pad(w1p, ((0, 0), (0, hid_pad)))
        b1p = jnp.pad(b1p, ((0, hid_pad),))
        w2p = jnp.pad(w2p, ((0, hid_pad), (0, 0)))

    b1_2d = b1p.reshape(1, h_p)
    b2_2d = b2p.reshape(1, f_p)

    @jax.jit
    def _apply(features, w1p, b1_2d, w2p, b2_2d):
        orig_shape = features.shape
        dtype = features.dtype
        x2d = features.reshape(-1, in_feats)
        m = x2d.shape[0]

        # Align rows to `pack` only (<= pack-1 pad rows).  Tile-granularity
        # raggedness is left to Pallas: OOB reads feed dead rows whose matmul
        # results never mix with live rows, OOB writes are masked.
        m_al = _round_up(m, pack)
        if m_al != m:
            x2d = jnp.pad(x2d, ((0, m_al - m), (0, 0)))
        m_pack = m_al // pack
        xp = x2d.reshape(m_pack, f_p)          # byte-identical lane repack

        # Big row tiles amortize the ~0.35us per-step pipeline overhead;
        # multiple of the dtype's sublane quantum.
        sub = {4: 8, 2: 16, 1: 32}.get(jnp.dtype(dtype).itemsize, 8)
        tm = max(sub, min(tm_max, _round_up(m_pack, sub)))
        grid = pl.cdiv(m_pack, tm)

        out_p = pl.pallas_call(
            _mlp_kernel,
            out_shape=jax.ShapeDtypeStruct((m_pack, f_p), dtype),
            grid_spec=pltpu.PrefetchScalarGridSpec(
                num_scalar_prefetch=0,
                grid=(grid,),
                in_specs=[
                    pl.BlockSpec((tm, f_p), lambda i: (i, 0)),   # packed x tile
                    pl.BlockSpec((f_p, h_p), lambda i: (0, 0)),  # W1 (VMEM-resident)
                    pl.BlockSpec((1, h_p), lambda i: (0, 0)),    # b1
                    pl.BlockSpec((h_p, f_p), lambda i: (0, 0)),  # W2 (VMEM-resident)
                    pl.BlockSpec((1, f_p), lambda i: (0, 0)),    # b2
                ],
                out_specs=pl.BlockSpec((tm, f_p), lambda i: (i, 0)),
            ),
            compiler_params=pltpu.CompilerParams(
                dimension_semantics=("parallel",),   # megacore-shard rows (v7x)
                vmem_limit_bytes=64 * 1024 * 1024,   # usage <=~28 MiB at tm=8192
            ),
        )(xp, w1p, b1_2d, w2p, b2_2d)

        out2d = out_p.reshape(m_al, in_feats)
        if m_al != m:
            out2d = out2d[:m]
        return out2d.reshape(orig_shape)

    return lambda features: _apply(features, w1p, b1_2d, w2p, b2_2d)


def _reference(features, w1, b1, w2, b2):
    h = jnp.maximum(features @ w1 + b1, 0.0)
    return h @ w2 + b2


if __name__ == "__main__":
    # Small shapes consistent with the module: in_feats=64, hidden=32.
    batch, seq, in_feats = 2, 8, 64
    hidden = in_feats // 2

    key = jax.random.PRNGKey(0)
    kx, kw1, kb1, kw2, kb2 = jax.random.split(key, 5)

    features = jax.random.normal(kx, (batch, seq, in_feats), dtype=jnp.float32)

    # Deterministic parameters (already-transposed [in, out] layout).
    w1 = jax.random.normal(kw1, (in_feats, hidden), dtype=jnp.float32) * 0.05
    b1 = jax.random.normal(kb1, (hidden,), dtype=jnp.float32) * 0.05
    w2 = jax.random.normal(kw2, (hidden, in_feats), dtype=jnp.float32) * 0.05
    b2 = jax.random.normal(kb2, (in_feats,), dtype=jnp.float32) * 0.05

    projector = make_non_linear_projector(w1, b1, w2, b2)

    out = jax.block_until_ready(projector(features))
    ref = _reference(features, w1, b1, w2, b2)
    assert out.shape == features.shape
    assert jnp.allclose(out, ref, atol=1e-5, rtol=1e-5)

    # Ragged row count (not a multiple of pack or of the row tile).
    feats2 = jax.random.normal(kx, (3, 7, in_feats), dtype=jnp.float32)
    out2 = jax.block_until_ready(projector(feats2))
    assert jnp.allclose(out2, _reference(feats2, w1, b1, w2, b2),
                        atol=1e-5, rtol=1e-5)

    # bf16 activations + weights (the largest bandwidth lever); f32 MXU accum.
    proj_bf16 = make_non_linear_projector(
        w1.astype(jnp.bfloat16), b1.astype(jnp.bfloat16),
        w2.astype(jnp.bfloat16), b2.astype(jnp.bfloat16))
    feats3 = jax.random.normal(kx, (4, 8, in_feats),
                               dtype=jnp.float32).astype(jnp.bfloat16)
    out3 = jax.block_until_ready(proj_bf16(feats3))
    ref3 = _reference(feats3.astype(jnp.float32), w1, b1, w2, b2)
    assert out3.dtype == jnp.bfloat16
    assert jnp.allclose(out3.astype(jnp.float32), ref3, atol=3e-2, rtol=3e-2)

    print("KERNEL_OK")
</pallas_src>

<mosaic_0001>
module attributes {stable_mosaic.version = 11 : i64} {
  func.func @_mlp_kernel(%arg0: i32, %arg1: memref<8x128xf32, #tpu.memory_space<vmem>>, %arg2: memref<128x128xf32, #tpu.memory_space<vmem>>, %arg3: memref<1x128xf32, #tpu.memory_space<vmem>>, %arg4: memref<128x128xf32, #tpu.memory_space<vmem>>, %arg5: memref<1x128xf32, #tpu.memory_space<vmem>>, %arg6: memref<8x128xf32, #tpu.memory_space<vmem>>) attributes {dimension_semantics = [#tpu.dimension_semantics<parallel>], iteration_bounds = array<i64: 1>, scalar_prefetch = 0 : i64, scratch_operands = 0 : i64, tpu.core_type = #tpu.core_type<tc>, window_params = [{transform_indices = @transform_0, window_bounds = array<i64: 8, 128>}, {pipeline_mode = #tpu.pipeline_mode<synchronous>, transform_indices = @transform_1, window_bounds = array<i64: 128, 128>}, {pipeline_mode = #tpu.pipeline_mode<synchronous>, transform_indices = @transform_2, window_bounds = array<i64: 1, 128>}, {pipeline_mode = #tpu.pipeline_mode<synchronous>, transform_indices = @transform_3, window_bounds = array<i64: 128, 128>}, {pipeline_mode = #tpu.pipeline_mode<synchronous>, transform_indices = @transform_4, window_bounds = array<i64: 1, 128>}, {transform_indices = @transform_5, window_bounds = array<i64: 8, 128>}]} {
    %c0 = arith.constant 0 : index
    %c0_0 = arith.constant 0 : index
    %0 = vector.load %arg1[%c0, %c0_0] : memref<8x128xf32, #tpu.memory_space<vmem>>, vector<8x128xf32>
    %c0_1 = arith.constant 0 : index
    %c0_2 = arith.constant 0 : index
    %1 = vector.load %arg2[%c0_1, %c0_2] : memref<128x128xf32, #tpu.memory_space<vmem>>, vector<128x128xf32>
    %cst = arith.constant dense<0.000000e+00> : vector<8x128xf32>
    %2 = tpu.matmul %0, %1, %cst {dimension_numbers = #tpu.dot_dimension_numbers<[1], [0], [0], [1], [0, 0, 1, 1], [], []>} : vector<8x128xf32>, vector<128x128xf32>, vector<8x128xf32> -> vector<8x128xf32>
    %c0_3 = arith.constant 0 : index
    %c0_4 = arith.constant 0 : index
    %3 = vector.load %arg3[%c0_3, %c0_4] : memref<1x128xf32, #tpu.memory_space<vmem>>, vector<1x128xf32>
    %4 = vector.broadcast %3 : vector<1x128xf32> to vector<8x128xf32>
    %5 = arith.addf %2, %4 : vector<8x128xf32>
    %cst_5 = arith.constant 0.000000e+00 : f32
    %6 = vector.broadcast %cst_5 : f32 to vector<8x128xf32>
    %7 = arith.maximumf %5, %6 : vector<8x128xf32>
    %c0_6 = arith.constant 0 : index
    %c0_7 = arith.constant 0 : index
    %8 = vector.load %arg4[%c0_6, %c0_7] : memref<128x128xf32, #tpu.memory_space<vmem>>, vector<128x128xf32>
    %cst_8 = arith.constant dense<0.000000e+00> : vector<8x128xf32>
    %9 = tpu.matmul %7, %8, %cst_8 {dimension_numbers = #tpu.dot_dimension_numbers<[1], [0], [0], [1], [0, 0, 1, 1], [], []>} : vector<8x128xf32>, vector<128x128xf32>, vector<8x128xf32> -> vector<8x128xf32>
    %c0_9 = arith.constant 0 : index
    %c0_10 = arith.constant 0 : index
    %10 = vector.load %arg5[%c0_9, %c0_10] : memref<1x128xf32, #tpu.memory_space<vmem>>, vector<1x128xf32>
    %11 = vector.broadcast %10 : vector<1x128xf32> to vector<8x128xf32>
    %12 = arith.addf %9, %11 : vector<8x128xf32>
    %c0_11 = arith.constant 0 : index
    %c0_12 = arith.constant 0 : index
    %13 = vector.load %arg6[%c0_11, %c0_12] : memref<8x128xf32, #tpu.memory_space<vmem>>, vector<8x128xf32>
    tpu.vector_store %arg6[%c0_11, %c0_12], %12 {strides = array<i32>} : memref<8x128xf32, #tpu.memory_space<vmem>>, vector<8x128xf32>,
    return
  }
  func.func @transform_0(%arg0: i32) -> (i32, i32) {
    %c0_i32 = arith.constant 0 : i32
    %c0_i32_0 = arith.constant 0 : i32
    return %arg0, %c0_i32 : i32, i32
  }
  func.func @transform_1(%arg0: i32) -> (i32, i32) {
    %c0_i32 = arith.constant 0 : i32
    %c0_i32_0 = arith.constant 0 : i32
    %c0_i32_1 = arith.constant 0 : i32
    return %c0_i32, %c0_i32_0 : i32, i32
  }
  func.func @transform_2(%arg0: i32) -> (i32, i32) {
    %c0_i32 = arith.constant 0 : i32
    %c0_i32_0 = arith.constant 0 : i32
    %c0_i32_1 = arith.constant 0 : i32
    return %c0_i32, %c0_i32_0 : i32, i32
  }
  func.func @transform_3(%arg0: i32) -> (i32, i32) {
    %c0_i32 = arith.constant 0 : i32
    %c0_i32_0 = arith.constant 0 : i32
    %c0_i32_1 = arith.constant 0 : i32
    return %c0_i32, %c0_i32_0 : i32, i32
  }
  func.func @transform_4(%arg0: i32) -> (i32, i32) {
    %c0_i32 = arith.constant 0 : i32
    %c0_i32_0 = arith.constant 0 : i32
    %c0_i32_1 = arith.constant 0 : i32
    return %c0_i32, %c0_i32_0 : i32, i32
  }
  func.func @transform_5(%arg0: i32) -> (i32, i32) {
    %c0_i32 = arith.constant 0 : i32
    %c0_i32_0 = arith.constant 0 : i32
    return %arg0, %c0_i32 : i32, i32
  }
}

</mosaic_0001>

<llo_original>
// kernel: _apply.1
$region0: #{_apply.1}
  #allocation0 [shape = 'u32[]', space=smem, size = 0x4, offset = 0x4, fixed_abs, tag = 'smem constant byte address 0x4 - core index']
  #allocation1 [shape = 'u32[144,128]{1,0:T(1,128)}', space=vmem, size = 0x12000, scoped, tag = 'internal scratch']
  %s0 = inlined_call_operand.vmem [shape: f32[8,128], index: 0, kind: input, shape index: {}]
  %s1 = inlined_call_operand.hbm [shape: f32[128,128], index: 1, kind: input, shape index: {}]
  %s2 = inlined_call_operand.vmem [shape: f32[1,128], index: 2, kind: input, shape index: {}]
  %s3 = inlined_call_operand.hbm [shape: f32[128,128], index: 3, kind: input, shape index: {}]
  %s4 = inlined_call_operand.vmem [shape: f32[1,128], index: 4, kind: input, shape index: {}]
  %s5 = inlined_call_operand.vmem [shape: f32[8,128], index: 5, kind: output, shape index: {}]
  %s6 = sld [smem:[#allocation0]]
  $region38: #{_apply.1} parent=0
    _
  %s8 = ssub.s32 1, %s6
  %s9 = scalar_select 0, %s8, %s6
  $region1: #{_apply.1} parent=0
    #allocation2 [shape = 'u8[65536]{0}', space=vmem, size = 0x10000, scoped, tag = 'input window, operand 1, single buffered']
    #allocation3 [shape = 's32[1]{0}', space=sflag, size = 0x4, scoped, tag = 'scoped memory for _apply.1']
    #allocation4 [shape = 'u8[65536]{0}', space=vmem, size = 0x10000, scoped, tag = 'input window, operand 3, single buffered']
    #allocation5 [shape = 's32[1]{0}', space=sflag, size = 0x4, scoped, tag = 'scoped memory for _apply.1']
    %10 = vsyncpa [#allocation3], 0
    %11 = vsyncpa [#allocation5], 0
    // Predicated region
    $region2: #{_apply.1} parent=1 // pred_check
      _
    $region3: #{_apply.1} parent=1 // pred_check_branch
      %13 = sbr.rel (0) target = $region5
    $region4: #{_apply.1} parent=1 // pred_region
      _
    $region5: #{_apply.1} parent=1 // pred_fallthru
      _
    // Predicated region
    $region6: #{_apply.1} parent=1 // pred_check
      _
    $region7: #{_apply.1} parent=1 // pred_check_branch
      %15 = sbr.rel (0) target = $region9
    $region8: #{_apply.1} parent=1 // pred_region
      %s17 = ssub.s32 2048, 2048
      %18 = vsyncadd [#allocation3], %s17
      %s19 = sshll.u32 [#allocation2], 4
      %s20 = int_to_ptr.vmem [resolvable:$true] %s19
      %25 = dma.hbm_to_vmem [thread:$0]  %s1, 2048, %s20, [#allocation3], 128, 128, 8
    $region9: #{_apply.1} parent=1 // pred_fallthru
      _
    // Predicated region
    $region10: #{_apply.1} parent=1 // pred_check
      _
    $region11: #{_apply.1} parent=1 // pred_check_branch
      %27 = sbr.rel (0) target = $region13
    $region12: #{_apply.1} parent=1 // pred_region
      _
    $region13: #{_apply.1} parent=1 // pred_fallthru
      _
    // Predicated region
    $region14: #{_apply.1} parent=1 // pred_check
      _
    $region15: #{_apply.1} parent=1 // pred_check_branch
      %29 = sbr.rel (0) target = $region17
    $region16: #{_apply.1} parent=1 // pred_region
      %s31 = ssub.s32 2048, 2048
      %32 = vsyncadd [#allocation5], %s31
      %s33 = sshll.u32 [#allocation4], 4
      %s34 = int_to_ptr.vmem [resolvable:$true] %s33
      %39 = dma.hbm_to_vmem [thread:$0]  %s3, 2048, %s34, [#allocation5], 128, 128, 8
    $region17: #{_apply.1} parent=1 // pred_fallthru
      _
    // Predicated region
    $region18: #{_apply.1} parent=1 // pred_check
      _
    $region19: #{_apply.1} parent=1 // pred_check_branch
      %41 = sbr.rel (0) target = $region21
    $region20: #{_apply.1} parent=1 // pred_region
      _
    $region21: #{_apply.1} parent=1 // pred_fallthru
      _
    // Predicated region
    $region22: #{_apply.1} parent=1 // pred_check
      _
    $region23: #{_apply.1} parent=1 // pred_check_branch
      %43 = sbr.rel (0) target = $region25
    $region24: #{_apply.1} parent=1 // pred_region
      %44 = dma.done [#allocation3], 2048
    $region25: #{_apply.1} parent=1 // pred_fallthru
      _
    // Predicated region
    $region26: #{_apply.1} parent=1 // pred_check
      _
    $region27: #{_apply.1} parent=1 // pred_check_branch
      %46 = sbr.rel (0) target = $region29
    $region28: #{_apply.1} parent=1 // pred_region
      %47 = dma.done [#allocation5], 2048
    $region29: #{_apply.1} parent=1 // pred_fallthru
      _
    %v48 = vld [vmem:[%s0] sm:$0xff]
    %v49 = vld [vmem:[#allocation2] sm:$0xff]
    %v50 = vld [vmem:[#allocation2 + $0x8] sm:$0xff]
    %v51 = vld [vmem:[#allocation2 + $0x10] sm:$0xff]
    %v52 = vld [vmem:[#allocation2 + $0x18] sm:$0xff]
    %v53 = vld [vmem:[#allocation2 + $0x20] sm:$0xff]
    %v54 = vld [vmem:[#allocation2 + $0x28] sm:$0xff]
    %v55 = vld [vmem:[#allocation2 + $0x30] sm:$0xff]
    %v56 = vld [vmem:[#allocation2 + $0x38] sm:$0xff]
    %v57 = vld [vmem:[#allocation2 + $0x40] sm:$0xff]
    %v58 = vld [vmem:[#allocation2 + $0x48] sm:$0xff]
    %v59 = vld [vmem:[#allocation2 + $0x50] sm:$0xff]
    %v60 = vld [vmem:[#allocation2 + $0x58] sm:$0xff]
    %v61 = vld [vmem:[#allocation2 + $0x60] sm:$0xff]
    %v62 = vld [vmem:[#allocation2 + $0x68] sm:$0xff]
    %v63 = vld [vmem:[#allocation2 + $0x70] sm:$0xff]
    %v64 = vld [vmem:[#allocation2 + $0x78] sm:$0xff]
    %v65 = vld [vmem:[%s2] sm:$0x1]
    %v67 = vlaneseq
    %v68 = vshrl.u32 %v67, 7
    %v69 = vsub.s32 0, %v68
    %v70 = vrot.slane %v65, %v69
    %72 = vmatprep.subr.mxu0 0.0
    %73 = vmatpush1.msra.mxu0 %v64
    %74 = vmatprep.subr.mxu0 0.0
    %75 = vmatpush1.msra.mxu0 %v63
    %76 = vmatprep.subr.mxu0 0.0
    %77 = vmatpush1.msra.mxu0 %v62
    %78 = vmatprep.subr.mxu0 0.0
    %79 = vmatpush1.msra.mxu0 %v61
    %80 = vmatprep.subr.mxu0 0.0
    %81 = vmatpush1.msra.mxu0 %v60
    %82 = vmatprep.subr.mxu0 0.0
    %83 = vmatpush1.msra.mxu0 %v59
    %84 = vmatprep.subr.mxu0 0.0
    %85 = vmatpush1.msra.mxu0 %v58
    %86 = vmatprep.subr.mxu0 0.0
    %87 = vmatpush1.msra.mxu0 %v57
    %88 = vmatprep.subr.mxu0 0.0
    %89 = vmatpush1.msra.mxu0 %v56
    %90 = vmatprep.subr.mxu0 0.0
    %91 = vmatpush1.msra.mxu0 %v55
    %92 = vmatprep.subr.mxu0 0.0
    %93 = vmatpush1.msra.mxu0 %v54
    %94 = vmatprep.subr.mxu0 0.0
    %95 = vmatpush1.msra.mxu0 %v53
    %96 = vmatprep.subr.mxu0 0.0
    %97 = vmatpush1.msra.mxu0 %v52
    %98 = vmatprep.subr.mxu0 0.0
    %99 = vmatpush1.msra.mxu0 %v51
    %100 = vmatprep.subr.mxu0 0.0
    %101 = vmatpush1.msra.mxu0 %v50
    %102 = vmatprep.subr.mxu0 0.0
    %103 = vmatpush1.msra.mxu0 %v49
    %104 = vmatprep.subr.mxu0 0.0
    %105 = vmatpush2.msra.mxu0 0.0
    %106 = vmatprep.subr.mxu0 0.0
    %107 = vmatpush2.msra.mxu0 0.0
    %108 = vmatprep.subr.mxu0 0.0
    %109 = vmatpush2.msra.mxu0 0.0
    %110 = vmatprep.subr.mxu0 0.0
    %111 = vmatpush2.msra.mxu0 0.0
    %112 = vmatprep.subr.mxu0 0.0
    %113 = vmatpush2.msra.mxu0 0.0
    %114 = vmatprep.subr.mxu0 0.0
    %115 = vmatpush2.msra.mxu0 0.0
    %116 = vmatprep.subr.mxu0 0.0
    %117 = vmatpush2.msra.mxu0 0.0
    %118 = vmatprep.subr.mxu0 0.0
    %119 = vmatpush2.msra.mxu0 0.0
    %120 = vmatprep.subr.mxu0 0.0
    %121 = vmatpush2.msra.mxu0 0.0
    %122 = vmatprep.subr.mxu0 0.0
    %123 = vmatpush2.msra.mxu0 0.0
    %124 = vmatprep.subr.mxu0 0.0
    %125 = vmatpush2.msra.mxu0 0.0
    %126 = vmatprep.subr.mxu0 0.0
    %127 = vmatpush2.msra.mxu0 0.0
    %128 = vmatprep.subr.mxu0 0.0
    %129 = vmatpush2.msra.mxu0 0.0
    %130 = vmatprep.subr.mxu0 0.0
    %131 = vmatpush2.msra.mxu0 0.0
    %132 = vmatprep.subr.mxu0 0.0
    %133 = vmatpush2.msra.mxu0 0.0
    %134 = vmatprep.subr.mxu0 0.0
    %135 = vmatpush2.msra.mxu0 0.0
    %136 = vmatprep.mubr.f32.mxu0 0.0
    %137 = vmatmul.mubr.f32.gmra.mxu0 %v48
    %v138 = vpop.f32.mrf.mxu0
    %v139 = vadd.f32 %v70, %v138
    %v140 = vpop.f32.mrf.mxu0
    %141 = vdwg.mxu0
    %v142 = vmax.f32 %v139, 0.0
    %v143 = vld [vmem:[#allocation4] sm:$0xff]
    %v144 = vld [vmem:[#allocation4 + $0x8] sm:$0xff]
    %v145 = vld [vmem:[#allocation4 + $0x10] sm:$0xff]
    %v146 = vld [vmem:[#allocation4 + $0x18] sm:$0xff]
    %v147 = vld [vmem:[#allocation4 + $0x20] sm:$0xff]
    %v148 = vld [vmem:[#allocation4 + $0x28] sm:$0xff]
    %v149 = vld [vmem:[#allocation4 + $0x30] sm:$0xff]
    %v150 = vld [vmem:[#allocation4 + $0x38] sm:$0xff]
    %v151 = vld [vmem:[#allocation4 + $0x40] sm:$0xff]
    %v152 = vld [vmem:[#allocation4 + $0x48] sm:$0xff]
    %v153 = vld [vmem:[#allocation4 + $0x50] sm:$0xff]
    %v154 = vld [vmem:[#allocation4 + $0x58] sm:$0xff]
    %v155 = vld [vmem:[#allocation4 + $0x60] sm:$0xff]
    %v156 = vld [vmem:[#allocation4 + $0x68] sm:$0xff]
    %v157 = vld [vmem:[#allocation4 + $0x70] sm:$0xff]
    %v158 = vld [vmem:[#allocation4 + $0x78] sm:$0xff]
    %v159 = vld [vmem:[%s4] sm:$0x1]
    %v161 = vlaneseq
    %v162 = vshrl.u32 %v161, 7
    %v163 = vsub.s32 0, %v162
    %v164 = vrot.slane %v159, %v163
    %166 = vmatprep.subr.mxu0 0.0
    %167 = vmatpush1.msra.mxu0 %v158
    %168 = vmatprep.subr.mxu0 0.0
    %169 = vmatpush1.msra.mxu0 %v157
    %170 = vmatprep.subr.mxu0 0.0
    %171 = vmatpush1.msra.mxu0 %v156
    %172 = vmatprep.subr.mxu0 0.0
    %173 = vmatpush1.msra.mxu0 %v155
    %174 = vmatprep.subr.mxu0 0.0
    %175 = vmatpush1.msra.mxu0 %v154
    %176 = vmatprep.subr.mxu0 0.0
    %177 = vmatpush1.msra.mxu0 %v153
    %178 = vmatprep.subr.mxu0 0.0
    %179 = vmatpush1.msra.mxu0 %v152
    %180 = vmatprep.subr.mxu0 0.0
    %181 = vmatpush1.msra.mxu0 %v151
    %182 = vmatprep.subr.mxu0 0.0
    %183 = vmatpush1.msra.mxu0 %v150
    %184 = vmatprep.subr.mxu0 0.0
    %185 = vmatpush1.msra.mxu0 %v149
    %186 = vmatprep.subr.mxu0 0.0
    %187 = vmatpush1.msra.mxu0 %v148
    %188 = vmatprep.subr.mxu0 0.0
    %189 = vmatpush1.msra.mxu0 %v147
    %190 = vmatprep.subr.mxu0 0.0
    %191 = vmatpush1.msra.mxu0 %v146
    %192 = vmatprep.subr.mxu0 0.0
    %193 = vmatpush1.msra.mxu0 %v145
    %194 = vmatprep.subr.mxu0 0.0
    %195 = vmatpush1.msra.mxu0 %v144
    %196 = vmatprep.subr.mxu0 0.0
    %197 = vmatpush1.msra.mxu0 %v143
    %198 = vmatprep.subr.mxu0 0.0
    %199 = vmatpush2.msra.mxu0 0.0
    %200 = vmatprep.subr.mxu0 0.0
    %201 = vmatpush2.msra.mxu0 0.0
    %202 = vmatprep.subr.mxu0 0.0
    %203 = vmatpush2.msra.mxu0 0.0
    %204 = vmatprep.subr.mxu0 0.0
    %205 = vmatpush2.msra.mxu0 0.0
    %206 = vmatprep.subr.mxu0 0.0
    %207 = vmatpush2.msra.mxu0 0.0
    %208 = vmatprep.subr.mxu0 0.0
    %209 = vmatpush2.msra.mxu0 0.0
    %210 = vmatprep.subr.mxu0 0.0
    %211 = vmatpush2.msra.mxu0 0.0
    %212 = vmatprep.subr.mxu0 0.0
    %213 = vmatpush2.msra.mxu0 0.0
    %214 = vmatprep.subr.mxu0 0.0
    %215 = vmatpush2.msra.mxu0 0.0
    %216 = vmatprep.subr.mxu0 0.0
    %217 = vmatpush2.msra.mxu0 0.0
    %218 = vmatprep.subr.mxu0 0.0
    %219 = vmatpush2.msra.mxu0 0.0
    %220 = vmatprep.subr.mxu0 0.0
    %221 = vmatpush2.msra.mxu0 0.0
    %222 = vmatprep.subr.mxu0 0.0
    %223 = vmatpush2.msra.mxu0 0.0
    %224 = vmatprep.subr.mxu0 0.0
    %225 = vmatpush2.msra.mxu0 0.0
    %226 = vmatprep.subr.mxu0 0.0
    %227 = vmatpush2.msra.mxu0 0.0
    %228 = vmatprep.subr.mxu0 0.0
    %229 = vmatpush2.msra.mxu0 0.0
    %230 = vmatprep.mubr.f32.mxu0 0.0
    %231 = vmatmul.mubr.f32.gmra.mxu0 %v142
    %v232 = vpop.f32.mrf.mxu0
    %v233 = vadd.f32 %v164, %v232
    %v234 = vpop.f32.mrf.mxu0
    %235 = vdwg.mxu0
    %236 = vst [vmem:[%s5] sm:$0xff] %v233
    // Predicated region
    $region30: #{_apply.1} parent=1 // pred_check
      _
    $region31: #{_apply.1} parent=1 // pred_check_branch
      %238 = sbr.rel (0) target = $region33
    $region32: #{_apply.1} parent=1 // pred_region
      _
    $region33: #{_apply.1} parent=1 // pred_fallthru
      _
    // Predicated region
    $region34: #{_apply.1} parent=1 // pred_check
      _
    $region35: #{_apply.1} parent=1 // pred_check_branch
      %240 = sbr.rel (0) target = $region37
    $region36: #{_apply.1} parent=1 // pred_region
      _
    $region37: #{_apply.1} parent=1 // pred_fallthru
      _
    %241 = vsyncpa [#allocation3], 1
    %242 = vsyncpa [#allocation5], 1

</llo_original>
